<compile_context>
chip_gen: v7x
topology: tpu7x:2x2x1
jax: 0.10.0
libtpu: 0.0.40
codegen_flags: <defaults>
</compile_context>

<pallas_src>
import math

import jax
import jax.numpy as jnp
from jax.experimental import pallas as pl
from jax.experimental.pallas import tpu as pltpu


def _round_up(x, m):
    return (x + m - 1) // m * m


def _hier_linear_kernel(scale_ref, x_ref, w_eps_ref, b_eps_ref, o_ref, acc_ref):
    """One (tm, tn) output tile; grid axis 2 (K) is the reduction axis.

    scale_ref : SMEM (2,)    f32  -> [w_scale, b_scale]
    x_ref     : VMEM (tm,tk) bf16 input activations tile
    w_eps_ref : VMEM (tk,tn) bf16 raw N(0,1) weight-noise tile
    b_eps_ref : VMEM (1, tn) f32  raw N(0,1) bias-noise tile
    o_ref     : VMEM (tm,tn) f32  output tile
    acc_ref   : VMEM (tm,tn) f32  accumulator scratch
    """
    k = pl.program_id(2)

    @pl.when(k == 0)
    def _():
        acc_ref[...] = jnp.zeros_like(acc_ref)

    # MXU matmul on the *raw* noise; the scalar std scale commutes with it.
    acc_ref[...] += jnp.dot(
        x_ref[...], w_eps_ref[...], preferred_element_type=jnp.float32
    )

    @pl.when(k == pl.num_programs(2) - 1)
    def _():
        w_scale = scale_ref[0]
        b_scale = scale_ref[1]
        o_ref[...] = (
            acc_ref[...] * w_scale + b_eps_ref[...] * b_scale
        ).astype(o_ref.dtype)


def hierarchical_linear_forward(
    X, params, key, *, scaled_variance=True, eps=1e-8,
    tm_max=128, tn_max=256, tk_max=512,
):
    """Functional equivalent of HierarchicalLinearReparameterization.forward."""
    n_in = X.shape[-1]
    n_out = params["n_out"]
    B = X.shape[0]

    k_wg, k_bg, k_wn, k_bn = jax.random.split(key, 4)

    # softplus on the learnable hyper-parameters (shape (1,) each).
    W_shape = jax.nn.softplus(params["W_shape"])
    W_rate = jax.nn.softplus(params["W_rate"])
    b_shape = jax.nn.softplus(params["b_shape"])
    b_rate = jax.nn.softplus(params["b_rate"])

    # Gamma(shape, rate).rsample() == Gamma(shape, 1).sample() / rate
    inv_W_var = jax.random.gamma(k_wg, W_shape) / W_rate
    inv_b_var = jax.random.gamma(k_bg, b_shape) / b_rate
    W_std = 1.0 / (jnp.sqrt(inv_W_var) + eps)
    b_std = 1.0 / (jnp.sqrt(inv_b_var) + eps)

    # Raw standard-normal noise; the scalar stds are applied inside the kernel.
    eps_W = jax.random.normal(k_wn, (n_in, n_out), dtype=jnp.float32)
    eps_b = jax.random.normal(k_bn, (1, n_out), dtype=jnp.float32)

    w_scale = W_std / math.sqrt(n_in) if scaled_variance else W_std
    scales = jnp.concatenate([w_scale, b_std]).astype(jnp.float32)  # (2,)

    # ---- tile sizes: lane-dense N (mult of 128), 8-aligned M, 128-aligned K ----
    tm = min(tm_max, _round_up(B, 8))
    tn = min(tn_max, _round_up(n_out, 128))
    tk = min(tk_max, _round_up(n_in, 128))
    Mp = _round_up(B, tm)
    Np = _round_up(n_out, tn)
    Kp = _round_up(n_in, tk)

    # Pad (zeros along K don't change the matmul; extra M/N rows/cols sliced off).
    Xp = jnp.pad(
        X.astype(jnp.float32), ((0, Mp - B), (0, Kp - n_in))
    ).astype(jnp.bfloat16)
    eps_Wp = jnp.pad(
        eps_W, ((0, Kp - n_in), (0, Np - n_out))
    ).astype(jnp.bfloat16)
    eps_bp = jnp.pad(eps_b, ((0, 0), (0, Np - n_out)))  # stays f32

    grid = (Mp // tm, Np // tn, Kp // tk)

    cost = pl.CostEstimate(
        flops=int(2 * Mp * Np * Kp),
        transcendentals=0,
        bytes_accessed=int(
            Xp.size * 2 + eps_Wp.size * 2 + eps_bp.size * 4 + Mp * Np * 4
        ),
    )

    out_p = pl.pallas_call(
        _hier_linear_kernel,
        out_shape=jax.ShapeDtypeStruct((Mp, Np), jnp.float32),
        grid_spec=pltpu.PrefetchScalarGridSpec(
            num_scalar_prefetch=0,
            grid=grid,
            in_specs=[
                pl.BlockSpec(memory_space=pltpu.MemorySpace.SMEM),      # scales
                pl.BlockSpec((tm, tk), lambda i, j, k: (i, k)),         # X
                pl.BlockSpec((tk, tn), lambda i, j, k: (k, j)),         # eps_W
                pl.BlockSpec((1, tn), lambda i, j, k: (0, j)),          # eps_b
            ],
            out_specs=pl.BlockSpec((tm, tn), lambda i, j, k: (i, j)),
            scratch_shapes=[pltpu.VMEM((tm, tn), jnp.float32)],
        ),
        compiler_params=pltpu.CompilerParams(
            dimension_semantics=("parallel", "parallel", "arbitrary"),
            vmem_limit_bytes=32 * 1024 * 1024,
        ),
        cost_estimate=cost,
    )(scales, Xp, eps_Wp, eps_bp)

    return out_p[:B, :n_out]


def init_params(n_in, n_out, W_shape=None, W_rate=None, b_shape=None, b_rate=None):
    """Deterministic init, matching the module __init__ (all ones(1) * value)."""
    W_shape = 1.0 if W_shape is None else W_shape
    W_rate = 1.0 if W_rate is None else W_rate
    b_shape = 1.0 if b_shape is None else b_shape
    b_rate = 1.0 if b_rate is None else b_rate
    return {
        "n_in": n_in,
        "n_out": n_out,
        "W_shape": jnp.ones((1,), jnp.float32) * W_shape,
        "W_rate": jnp.ones((1,), jnp.float32) * W_rate,
        "b_shape": jnp.ones((1,), jnp.float32) * b_shape,
        "b_rate": jnp.ones((1,), jnp.float32) * b_rate,
    }


if __name__ == "__main__":
    n_in, n_out, batch = 32, 32, 8

    key = jax.random.PRNGKey(0)
    k_x, k_fwd = jax.random.split(key)

    params = init_params(n_in, n_out)
    X = jax.random.normal(k_x, (batch, n_in), dtype=jnp.float32)

    out = hierarchical_linear_forward(X, params, k_fwd)
    jax.block_until_ready(out)
    assert out.shape == (batch, n_out)

    # Pure-JAX reference with identical sampled noise. `bf16=True` mirrors the
    # kernel's numerics (bf16 MXU inputs, f32 accumulation, scalar scale applied
    # to the output); `bf16=False` is the full-precision module semantics.
    def reference(X, params, key, eps=1e-8, bf16=True):
        k_wg, k_bg, k_wn, k_bn = jax.random.split(key, 4)
        W_shape = jax.nn.softplus(params["W_shape"])
        W_rate = jax.nn.softplus(params["W_rate"])
        b_shape = jax.nn.softplus(params["b_shape"])
        b_rate = jax.nn.softplus(params["b_rate"])
        inv_W_var = jax.random.gamma(k_wg, W_shape) / W_rate
        inv_b_var = jax.random.gamma(k_bg, b_shape) / b_rate
        W_std = 1.0 / (jnp.sqrt(inv_W_var) + eps)
        b_std = 1.0 / (jnp.sqrt(inv_b_var) + eps)
        eps_W = jax.random.normal(k_wn, (n_in, n_out), jnp.float32)
        eps_b = jax.random.normal(k_bn, (1, n_out), jnp.float32)
        w_scale = W_std / math.sqrt(n_in)
        dt = jnp.bfloat16 if bf16 else jnp.float32
        acc = jnp.dot(
            X.astype(dt), eps_W.astype(dt), preferred_element_type=jnp.float32
        )
        return acc * w_scale + eps_b * b_std

    ref_exact = reference(X, params, k_fwd, bf16=True)   # kernel-exact numerics
    ref_f32 = reference(X, params, k_fwd, bf16=False)    # module semantics

    assert jnp.allclose(out, ref_exact, atol=1e-4, rtol=1e-4)
    assert jnp.allclose(out, ref_f32, atol=1e-1, rtol=1e-1)
    print("KERNEL_OK")
</pallas_src>

<mosaic_0001>
module attributes {stable_mosaic.version = 11 : i64} {
  func.func @_hier_linear_kernel(%arg0: i32, %arg1: i32, %arg2: i32, %arg3: memref<2xf32, #tpu.memory_space<smem>>, %arg4: memref<8x128xbf16, #tpu.memory_space<vmem>>, %arg5: memref<128x128xbf16, #tpu.memory_space<vmem>>, %arg6: memref<1x128xf32, #tpu.memory_space<vmem>>, %arg7: memref<8x128xf32, #tpu.memory_space<vmem>>, %arg8: memref<8x128xf32, #tpu.memory_space<vmem>>) attributes {dimension_semantics = [#tpu.dimension_semantics<parallel>, #tpu.dimension_semantics<parallel>, #tpu.dimension_semantics<arbitrary>], iteration_bounds = array<i64: 1, 1, 1>, scalar_prefetch = 0 : i64, scratch_operands = 1 : i64, tpu.core_type = #tpu.core_type<tc>, window_params = [{transform_indices = @transform_0, window_bounds = array<i64: 2>}, {transform_indices = @transform_1, window_bounds = array<i64: 8, 128>}, {transform_indices = @transform_2, window_bounds = array<i64: 128, 128>}, {transform_indices = @transform_3, window_bounds = array<i64: 1, 128>}, {transform_indices = @transform_4, window_bounds = array<i64: 8, 128>}]} {
    %c0_i32 = arith.constant 0 : i32
    %0 = arith.cmpi eq, %arg2, %c0_i32 : i32
    %1 = arith.extui %0 : i1 to i32
    %c0_i32_0 = arith.constant 0 : i32
    %2 = arith.cmpi ne, %1, %c0_i32_0 : i32
    scf.if %2 {
      %cst_10 = arith.constant 0.000000e+00 : f32
      %12 = vector.broadcast %cst_10 : f32 to vector<8x128xf32>
      %c0_11 = arith.constant 0 : index
      %c0_12 = arith.constant 0 : index
      %13 = vector.load %arg8[%c0_11, %c0_12] : memref<8x128xf32, #tpu.memory_space<vmem>>, vector<8x128xf32>
      tpu.vector_store %arg8[%c0_11, %c0_12], %12 {strides = array<i32>} : memref<8x128xf32, #tpu.memory_space<vmem>>, vector<8x128xf32>,
    } else {
    }
    %c0 = arith.constant 0 : index
    %c0_1 = arith.constant 0 : index
    %3 = vector.load %arg8[%c0, %c0_1] : memref<8x128xf32, #tpu.memory_space<vmem>>, vector<8x128xf32>
    %c0_2 = arith.constant 0 : index
    %c0_3 = arith.constant 0 : index
    %4 = vector.load %arg4[%c0_2, %c0_3] : memref<8x128xbf16, #tpu.memory_space<vmem>>, vector<8x128xbf16>
    %c0_4 = arith.constant 0 : index
    %c0_5 = arith.constant 0 : index
    %5 = vector.load %arg5[%c0_4, %c0_5] : memref<128x128xbf16, #tpu.memory_space<vmem>>, vector<128x128xbf16>
    %cst = arith.constant dense<0.000000e+00> : vector<8x128xf32>
    %6 = tpu.matmul %4, %5, %cst {dimension_numbers = #tpu.dot_dimension_numbers<[1], [0], [0], [1], [0, 0, 1, 1], [], []>} : vector<8x128xbf16>, vector<128x128xbf16>, vector<8x128xf32> -> vector<8x128xf32>
    %7 = arith.addf %3, %6 : vector<8x128xf32>
    %c0_6 = arith.constant 0 : index
    %c0_7 = arith.constant 0 : index
    %8 = vector.load %arg8[%c0_6, %c0_7] : memref<8x128xf32, #tpu.memory_space<vmem>>, vector<8x128xf32>
    tpu.vector_store %arg8[%c0_6, %c0_7], %7 {strides = array<i32>} : memref<8x128xf32, #tpu.memory_space<vmem>>, vector<8x128xf32>,
    %c0_i32_8 = arith.constant 0 : i32
    %9 = arith.cmpi eq, %arg2, %c0_i32_8 : i32
    %10 = arith.extui %9 : i1 to i32
    %c0_i32_9 = arith.constant 0 : i32
    %11 = arith.cmpi ne, %10, %c0_i32_9 : i32
    scf.if %11 {
      %c0_10 = arith.constant 0 : index
      %12 = memref.load %arg3[%c0_10] : memref<2xf32, #tpu.memory_space<smem>>
      %c1 = arith.constant 1 : index
      %13 = memref.load %arg3[%c1] : memref<2xf32, #tpu.memory_space<smem>>
      %c0_11 = arith.constant 0 : index
      %c0_12 = arith.constant 0 : index
      %14 = vector.load %arg8[%c0_11, %c0_12] : memref<8x128xf32, #tpu.memory_space<vmem>>, vector<8x128xf32>
      %15 = vector.broadcast %12 : f32 to vector<8x128xf32>
      %16 = arith.mulf %14, %15 : vector<8x128xf32>
      %c0_13 = arith.constant 0 : index
      %c0_14 = arith.constant 0 : index
      %17 = vector.load %arg6[%c0_13, %c0_14] : memref<1x128xf32, #tpu.memory_space<vmem>>, vector<1x128xf32>
      %18 = vector.broadcast %13 : f32 to vector<1x128xf32>
      %19 = arith.mulf %17, %18 : vector<1x128xf32>
      %20 = vector.broadcast %19 : vector<1x128xf32> to vector<8x128xf32>
      %21 = arith.addf %16, %20 : vector<8x128xf32>
      %c0_15 = arith.constant 0 : index
      %c0_16 = arith.constant 0 : index
      %22 = vector.load %arg7[%c0_15, %c0_16] : memref<8x128xf32, #tpu.memory_space<vmem>>, vector<8x128xf32>
      tpu.vector_store %arg7[%c0_15, %c0_16], %21 {strides = array<i32>} : memref<8x128xf32, #tpu.memory_space<vmem>>, vector<8x128xf32>,
    } else {
    }
    return
  }
  func.func @transform_0(%arg0: i32, %arg1: i32, %arg2: i32) -> i32 {
    %c0_i32 = arith.constant 0 : i32
    %c0_i32_0 = arith.constant 0 : i32
    return %c0_i32 : i32
  }
  func.func @transform_1(%arg0: i32, %arg1: i32, %arg2: i32) -> (i32, i32) {
    %c0_i32 = arith.constant 0 : i32
    return %arg0, %arg2 : i32, i32
  }
  func.func @transform_2(%arg0: i32, %arg1: i32, %arg2: i32) -> (i32, i32) {
    %c0_i32 = arith.constant 0 : i32
    return %arg2, %arg1 : i32, i32
  }
  func.func @transform_3(%arg0: i32, %arg1: i32, %arg2: i32) -> (i32, i32) {
    %c0_i32 = arith.constant 0 : i32
    %c0_i32_0 = arith.constant 0 : i32
    return %c0_i32, %arg1 : i32, i32
  }
  func.func @transform_4(%arg0: i32, %arg1: i32, %arg2: i32) -> (i32, i32) {
    %c0_i32 = arith.constant 0 : i32
    return %arg0, %arg1 : i32, i32
  }
}

</mosaic_0001>

<llo_original>
// kernel: tpu_custom_call.1
$region0: #{tpu_custom_call.1}
  #allocation0 [shape = 'u32[]', space=smem, size = 0x4, offset = 0x4, fixed_abs, tag = 'smem constant byte address 0x4 - core index']
  #allocation1 [shape = 'u32[144,128]{1,0:T(1,128)}', space=vmem, size = 0x12000, scoped, tag = 'internal scratch']
  #allocation2 [shape = 'f32[8,128]{1,0:T(8,128)}', space=vmem, size = 0x1000, scoped, tag = 'scratch operand']
  %s0 = inlined_call_operand.hbm [shape: f32[2], index: 0, kind: input, shape index: {}]
  %s1 = inlined_call_operand.hbm [shape: bf16[8,128], index: 1, kind: input, shape index: {}]
  %s2 = inlined_call_operand.hbm [shape: bf16[128,128], index: 2, kind: input, shape index: {}]
  %s3 = inlined_call_operand.vmem [shape: f32[1,128], index: 3, kind: input, shape index: {}]
  %s4 = inlined_call_operand.hbm [shape: f32[8,128], index: 4, kind: output, shape index: {}]
  %s5 = sld [smem:[#allocation0]]
  $region46: #{tpu_custom_call.1} parent=0
    _
  %s7 = ssub.s32 1, %s5
  %s8 = scalar_select 0, %s7, %s5
  $region1: #{tpu_custom_call.1} parent=0
    #allocation3 [shape = 'u8[512]{0}', space=smem, size = 0x200, scoped, tag = 'input window, operand 0, single buffered']
    #allocation4 [shape = 's32[1]{0}', space=sflag, size = 0x4, scoped, tag = 'scoped memory for tpu_custom_call.1']
    #allocation5 [shape = 's32[1]{0}', space=sflag, size = 0x4, scoped, tag = 'scoped memory for tpu_custom_call.1']
    #allocation6 [shape = 's32[1]{0}', space=sflag, size = 0x4, scoped, tag = 'scoped memory for tpu_custom_call.1']
    #allocation7 [shape = 'u8[2048]{0}', space=vmem, size = 0x800, scoped, tag = 'input window, operand 1, single buffered']
    #allocation8 [shape = 'u8[32768]{0}', space=vmem, size = 0x8000, scoped, tag = 'input window, operand 2, single buffered']
    #allocation9 [shape = 's32[1]{0}', space=sflag, size = 0x4, scoped, tag = 'scoped memory for tpu_custom_call.1']
    #allocation10 [shape = 'u8[4096]{0}', space=vmem, size = 0x1000, scoped, tag = 'output window, operand 0, single buffered']
    %9 = vsyncpa [#allocation6], 0
    %10 = vsyncpa [#allocation4], 0
    %11 = vsyncpa [#allocation9], 0
    %12 = vsyncpa [#allocation5], 0
    // Predicated region
    $region2: #{tpu_custom_call.1} parent=1 // pred_check
      _
    $region3: #{tpu_custom_call.1} parent=1 // pred_check_branch
      %14 = sbr.rel (0) target = $region5
    $region4: #{tpu_custom_call.1} parent=1 // pred_region
      %s16 = ssub.s32 16, 16
      %17 = vsyncadd [#allocation6], %s16
      %20 = dma.hbm_to_smem %s0, 16, [#allocation3], [#allocation6]
    $region5: #{tpu_custom_call.1} parent=1 // pred_fallthru
      _
    // Predicated region
    $region6: #{tpu_custom_call.1} parent=1 // pred_check
      _
    $region7: #{tpu_custom_call.1} parent=1 // pred_check_branch
      %22 = sbr.rel (0) target = $region9
    $region8: #{tpu_custom_call.1} parent=1 // pred_region
      %s24 = ssub.s32 64, 64
      %25 = vsyncadd [#allocation4], %s24
      %s27 = sshll.u32 [#allocation7], 4
      %s28 = int_to_ptr.vmem [resolvable:$true] %s27
      %30 = dma.hbm_to_vmem [thread:$0]  %s1, 64, %s28, [#allocation4]
    $region9: #{tpu_custom_call.1} parent=1 // pred_fallthru
      _
    // Predicated region
    $region10: #{tpu_custom_call.1} parent=1 // pred_check
      _
    $region11: #{tpu_custom_call.1} parent=1 // pred_check_branch
      %32 = sbr.rel (0) target = $region13
    $region12: #{tpu_custom_call.1} parent=1 // pred_region
      %s34 = ssub.s32 1024, 1024
      %35 = vsyncadd [#allocation9], %s34
      %s36 = sshll.u32 [#allocation8], 4
      %s37 = int_to_ptr.vmem [resolvable:$true] %s36
      %42 = dma.hbm_to_vmem [thread:$0]  %s2, 1024, %s37, [#allocation9], 64, 64, 4
    $region13: #{tpu_custom_call.1} parent=1 // pred_fallthru
      _
    // Predicated region
    $region14: #{tpu_custom_call.1} parent=1 // pred_check
      _
    $region15: #{tpu_custom_call.1} parent=1 // pred_check_branch
      %44 = sbr.rel (0) target = $region17
    $region16: #{tpu_custom_call.1} parent=1 // pred_region
      _
    $region17: #{tpu_custom_call.1} parent=1 // pred_fallthru
      _
    // Predicated region
    $region18: #{tpu_custom_call.1} parent=1 // pred_check
      _
    $region19: #{tpu_custom_call.1} parent=1 // pred_check_branch
      %46 = sbr.rel (0) target = $region21
    $region20: #{tpu_custom_call.1} parent=1 // pred_region
      %47 = dma.done [#allocation6], 16
    $region21: #{tpu_custom_call.1} parent=1 // pred_fallthru
      _
    // Predicated region
    $region22: #{tpu_custom_call.1} parent=1 // pred_check
      _
    $region23: #{tpu_custom_call.1} parent=1 // pred_check_branch
      %49 = sbr.rel (0) target = $region25
    $region24: #{tpu_custom_call.1} parent=1 // pred_region
      %50 = dma.done [#allocation4], 64
    $region25: #{tpu_custom_call.1} parent=1 // pred_fallthru
      _
    // Predicated region
    $region26: #{tpu_custom_call.1} parent=1 // pred_check
      _
    $region27: #{tpu_custom_call.1} parent=1 // pred_check_branch
      %52 = sbr.rel (0) target = $region29
    $region28: #{tpu_custom_call.1} parent=1 // pred_region
      %53 = dma.done [#allocation9], 1024
    $region29: #{tpu_custom_call.1} parent=1 // pred_fallthru
      _
    %54 = sfence
    %p56 = scmp.eq.s32.totalorder 0, 0
    // Predicated region
    $region30: #{tpu_custom_call.1} parent=1 // pred_check
      %p57 = pneg %p56
    $region31: #{tpu_custom_call.1} parent=1 // pred_check_branch
      %59 = sbr.rel (%p57) target = $region33
    $region32: #{tpu_custom_call.1} parent=1 // pred_region
      %60 = vst [vmem:[#allocation2] sm:$0xff] 0.0
    $region33: #{tpu_custom_call.1} parent=1 // pred_fallthru
      _
    %v61 = vld [vmem:[#allocation2] sm:$0xff]
    %v62 = vld [vmem:[#allocation7] sm:$0xf]
    %v63 = vld [vmem:[#allocation8] sm:$0xf]
    %v64 = vld [vmem:[#allocation8 + $0x4] sm:$0xf]
    %v65 = vld [vmem:[#allocation8 + $0x8] sm:$0xf]
    %v66 = vld [vmem:[#allocation8 + $0xc] sm:$0xf]
    %v67 = vld [vmem:[#allocation8 + $0x10] sm:$0xf]
    %v68 = vld [vmem:[#allocation8 + $0x14] sm:$0xf]
    %v69 = vld [vmem:[#allocation8 + $0x18] sm:$0xf]
    %v70 = vld [vmem:[#allocation8 + $0x1c] sm:$0xf]
    %v71 = vld [vmem:[#allocation8 + $0x20] sm:$0xf]
    %v72 = vld [vmem:[#allocation8 + $0x24] sm:$0xf]
    %v73 = vld [vmem:[#allocation8 + $0x28] sm:$0xf]
    %v74 = vld [vmem:[#allocation8 + $0x2c] sm:$0xf]
    %v75 = vld [vmem:[#allocation8 + $0x30] sm:$0xf]
    %v76 = vld [vmem:[#allocation8 + $0x34] sm:$0xf]
    %v77 = vld [vmem:[#allocation8 + $0x38] sm:$0xf]
    %v78 = vld [vmem:[#allocation8 + $0x3c] sm:$0xf]
    %v95 = vunpack.c.l.b16 %v63
    %v96 = vunpack.c.l.b16 %v64
    %v97 = vunpack.c.l.b16 %v65
    %v98 = vunpack.c.l.b16 %v66
    %v99 = vunpack.c.l.b16 %v67
    %v100 = vunpack.c.l.b16 %v68
    %v101 = vunpack.c.l.b16 %v69
    %v102 = vunpack.c.l.b16 %v70
    %v103 = vunpack.c.l.b16 %v71
    %v104 = vunpack.c.l.b16 %v72
    %v105 = vunpack.c.l.b16 %v73
    %v106 = vunpack.c.l.b16 %v74
    %v107 = vunpack.c.l.b16 %v75
    %v108 = vunpack.c.l.b16 %v76
    %v109 = vunpack.c.l.b16 %v77
    %v110 = vunpack.c.l.b16 %v78
    %v111 = vpack.c.b16 %v96, %v95
    %v112 = vpack.c.b16 %v98, %v97
    %v113 = vpack.c.b16 %v100, %v99
    %v114 = vpack.c.b16 %v102, %v101
    %v115 = vpack.c.b16 %v104, %v103
    %v116 = vpack.c.b16 %v106, %v105
    %v117 = vpack.c.b16 %v108, %v107
    %v118 = vpack.c.b16 %v110, %v109
    %127 = vmatprep.subr.bf16.mxu0 0
    %128 = vmatpush1.bf16.msra.mxu0 %v111
    %129 = vmatprep.subr.bf16.mxu0 0
    %130 = vmatpush1.bf16.msra.mxu0 %v112
    %131 = vmatprep.subr.bf16.mxu0 0
    %132 = vmatpush1.bf16.msra.mxu0 %v113
    %133 = vmatprep.subr.bf16.mxu0 0
    %134 = vmatpush1.bf16.msra.mxu0 %v114
    %135 = vmatprep.subr.bf16.mxu0 0
    %136 = vmatpush1.bf16.msra.mxu0 %v115
    %137 = vmatprep.subr.bf16.mxu0 0
    %138 = vmatpush1.bf16.msra.mxu0 %v116
    %139 = vmatprep.subr.bf16.mxu0 0
    %140 = vmatpush1.bf16.msra.mxu0 %v117
    %141 = vmatprep.subr.bf16.mxu0 0
    %142 = vmatpush1.bf16.msra.mxu0 %v118
    %143 = vmatprep.subr.bf16.mxu0 0
    %144 = vmatpush1.bf16.msra.mxu0 0
    %145 = vmatprep.subr.bf16.mxu0 0
    %146 = vmatpush1.bf16.msra.mxu0 0
    %147 = vmatprep.subr.bf16.mxu0 0
    %148 = vmatpush1.bf16.msra.mxu0 0
    %149 = vmatprep.subr.bf16.mxu0 0
    %150 = vmatpush1.bf16.msra.mxu0 0
    %151 = vmatprep.subr.bf16.mxu0 0
    %152 = vmatpush1.bf16.msra.mxu0 0
    %153 = vmatprep.subr.bf16.mxu0 0
    %154 = vmatpush1.bf16.msra.mxu0 0
    %155 = vmatprep.subr.bf16.mxu0 0
    %156 = vmatpush1.bf16.msra.mxu0 0
    %157 = vmatprep.subr.bf16.mxu0 0
    %158 = vmatpush1.bf16.msra.mxu0 0
    %159 = vmatprep.mubr.bf16.mxu0 0
    %160 = vmatmul.mubr.bf16.gmra.mrb[0].mxu0 %v62
    %v161 = vpop.f32.mrb[0].mxu0
    %v162 = vadd.f32 0.0, %v161
    %v163 = vpop.f32.mrb[0].mxu0
    %v164 = vpop.f32.mrb[0].mxu0
    %v165 = vpop.f32.mrb[0].mxu0
    %166 = vdwg.mxu0
    %v167 = vadd.f32 %v61, %v162
    %168 = vst [vmem:[#allocation2] sm:$0xff] %v167
    // Predicated region
    $region34: #{tpu_custom_call.1} parent=1 // pred_check
      %p169 = pneg %p56
    $region35: #{tpu_custom_call.1} parent=1 // pred_check_branch
      %171 = sbr.rel (%p169) target = $region37
    $region36: #{tpu_custom_call.1} parent=1 // pred_region
      %s172 = sld [smem:[#allocation3]]
      %s173 = sld [smem:[#allocation3 + $0x1]]
      %v174 = vld [vmem:[#allocation2] sm:$0xff]
      %v175 = vstv %s172
      %v176 = vmul.f32 %v174, %v175
      %v177 = vld [vmem:[%s3] sm:$0x1]
      %v178 = vstv %s173
      %v179 = vmul.f32 %v177, %v178
      %v181 = vlaneseq
      %v182 = vshrl.u32 %v181, 7
      %v183 = vsub.s32 0, %v182
      %v184 = vrot.slane %v179, %v183
      %v186 = vadd.f32 %v176, %v184
      %187 = vst [vmem:[#allocation10] sm:$0xff] %v186
    $region37: #{tpu_custom_call.1} parent=1 // pred_fallthru
      _
    // Predicated region
    $region38: #{tpu_custom_call.1} parent=1 // pred_check
      _
    $region39: #{tpu_custom_call.1} parent=1 // pred_check_branch
      %189 = sbr.rel (0) target = $region41
    $region40: #{tpu_custom_call.1} parent=1 // pred_region
      %s191 = ssub.s32 128, 128
      %192 = vsyncadd [#allocation5], %s191
      %s194 = sshll.u32 [#allocation10], 4
      %s195 = int_to_ptr.vmem [resolvable:$true] %s194
      %197 = dma.vmem_to_hbm [thread:$0]  %s195, 128, %s4, [#allocation5]
    $region41: #{tpu_custom_call.1} parent=1 // pred_fallthru
      _
    // Predicated region
    $region42: #{tpu_custom_call.1} parent=1 // pred_check
      _
    $region43: #{tpu_custom_call.1} parent=1 // pred_check_branch
      %199 = sbr.rel (0) target = $region45
    $region44: #{tpu_custom_call.1} parent=1 // pred_region
      %200 = dma.done [#allocation5], 128
    $region45: #{tpu_custom_call.1} parent=1 // pred_fallthru
      _
    %201 = vsyncpa [#allocation4], 1
    %202 = vsyncpa [#allocation9], 1
    %203 = vsyncpa [#allocation5], 1
    %204 = vsyncpa [#allocation6], 1

</llo_original>
